<compile_context>
chip_gen: v5e
topology: v5e:2x2
jax: 0.10.0
libtpu: 0.0.40
codegen_flags: <defaults>
</compile_context>

<pallas_src>
import functools

import jax
import jax.numpy as jnp
from jax.experimental import pallas as pl
from jax.experimental.pallas import tpu as pltpu


def _triplet_loss_kernel(anchor_ref, pos_ref, neg_ref, partial_ref, *,
                         margin, batch):
    """One grid step: partial (unscaled) sum of relu(d_ap - d_an + margin)."""
    i = pl.program_id(0)

    a = anchor_ref[...].astype(jnp.float32)
    p = pos_ref[...].astype(jnp.float32)
    n = neg_ref[...].astype(jnp.float32)

    # d_ap - d_an = sum((a-p)^2 - (a-n)^2, 1) = sum((n - p) * (2a - p - n), 1)
    # -> a single cross-lane (XLU) reduction per tile.
    diff = jnp.sum((n - p) * (2.0 * a - p - n), axis=1, keepdims=True)  # (TB,1)
    losses = jnp.maximum(diff + margin, 0.0)                            # relu

    # Mask rows of the (padded) last tile that lie past the true batch size.
    # Only emitted when padding can actually occur (compile-time known).
    tb = anchor_ref.shape[0]
    if batch % tb != 0:
        row = jax.lax.broadcasted_iota(jnp.int32, (tb, 1), 0) + i * tb
        losses = jnp.where(row < batch, losses, 0.0)

    partial_ref[0, 0] = jnp.sum(losses)


def _choose_tile(batch, dim, itemsize):
    # 3 inputs x 2 pipeline buffers x (tb * d_pad * itemsize) <= ~24 MiB:
    # safe on every generation (incl. v7x's 64 MiB VMEM / 32 MiB default
    # scoped limit) while staying well past the >=512-row regime where the
    # ~0.35us per-grid-step overhead is hidden.
    budget = 24 * 1024 * 1024
    d_pad = ((dim + 127) // 128) * 128          # VMEM lane padding
    max_tb = budget // (6 * d_pad * itemsize)
    max_tb = max(8, (max_tb // 8) * 8)
    padded_b = ((batch + 7) // 8) * 8
    return max(8, min(max_tb, padded_b))


def triplet_loss(anchor, positive, negative, margin, size_average=True, *,
                 tb=None):
    """JAX wrapper reproducing TripletLoss.forward.

    anchor/positive/negative: (B, D) float arrays (f32 or bf16).
    Returns a scalar float32.
    """
    assert anchor.shape == positive.shape == negative.shape
    B, D = anchor.shape
    itemsize = jnp.dtype(anchor.dtype).itemsize
    if tb is None:
        tb = _choose_tile(B, D, itemsize)
    num_tiles = pl.cdiv(B, tb)

    kernel = functools.partial(
        _triplet_loss_kernel, margin=float(margin), batch=int(B))

    in_spec = pl.BlockSpec((tb, D), lambda i: (i, 0))
    partials = pl.pallas_call(
        kernel,
        grid=(num_tiles,),
        in_specs=[in_spec, in_spec, in_spec],
        out_specs=pl.BlockSpec((1, 1), lambda i: (i, 0),
                               memory_space=pltpu.MemorySpace.SMEM),
        out_shape=jax.ShapeDtypeStruct((num_tiles, 1), jnp.float32),
        compiler_params=pltpu.CompilerParams(
            dimension_semantics=("parallel",)),
    )(anchor, positive, negative)

    total = jnp.sum(partials)
    if size_average:
        total = total * jnp.float32(1.0 / B)
    return total


def triplet_loss_ref(anchor, positive, negative, margin, size_average=True):
    """Pure-JAX reference (mirrors the PyTorch module), computed in f32."""
    a = anchor.astype(jnp.float32)
    p = positive.astype(jnp.float32)
    n = negative.astype(jnp.float32)
    d_ap = jnp.sum((a - p) ** 2, axis=1)
    d_an = jnp.sum((a - n) ** 2, axis=1)
    losses = jax.nn.relu(d_ap - d_an + margin)
    return jnp.mean(losses) if size_average else jnp.sum(losses)


if __name__ == "__main__":
    key = jax.random.PRNGKey(0)
    margin = 0.3

    # --- Test 1: small canonical shape (B=8, D=32), f32, mean & sum -------
    B, D = 8, 32
    k_a, k_p, k_n, key = jax.random.split(key, 4)
    anchor = jax.random.normal(k_a, (B, D), dtype=jnp.float32)
    positive = jax.random.normal(k_p, (B, D), dtype=jnp.float32)
    negative = jax.random.normal(k_n, (B, D), dtype=jnp.float32)

    loss_mean = jax.block_until_ready(
        triplet_loss(anchor, positive, negative, margin, size_average=True))
    ref_mean = triplet_loss_ref(anchor, positive, negative, margin, True)
    assert jnp.allclose(loss_mean, ref_mean, rtol=1e-5, atol=1e-5), (
        loss_mean, ref_mean)

    loss_sum = jax.block_until_ready(
        triplet_loss(anchor, positive, negative, margin, size_average=False))
    ref_sum = triplet_loss_ref(anchor, positive, negative, margin, False)
    assert jnp.allclose(loss_sum, ref_sum, rtol=1e-5, atol=1e-5), (
        loss_sum, ref_sum)

    # --- Test 2: B not a multiple of the tile -> multi-step grid + masking -
    B2 = 20
    k_a, k_p, k_n, key = jax.random.split(key, 4)
    a2 = jax.random.normal(k_a, (B2, D), dtype=jnp.float32)
    p2 = jax.random.normal(k_p, (B2, D), dtype=jnp.float32)
    n2 = jax.random.normal(k_n, (B2, D), dtype=jnp.float32)

    loss2 = jax.block_until_ready(
        triplet_loss(a2, p2, n2, margin, size_average=True, tb=8))
    ref2 = triplet_loss_ref(a2, p2, n2, margin, True)
    assert jnp.allclose(loss2, ref2, rtol=1e-5, atol=1e-5), (loss2, ref2)

    loss2s = jax.block_until_ready(
        triplet_loss(a2, p2, n2, margin, size_average=False, tb=8))
    ref2s = triplet_loss_ref(a2, p2, n2, margin, False)
    assert jnp.allclose(loss2s, ref2s, rtol=1e-5, atol=1e-5), (loss2s, ref2s)

    # --- Test 3: bf16 inputs (half the HBM traffic), f32 math in-kernel ----
    B3 = 16
    k_a, k_p, k_n, key = jax.random.split(key, 4)
    a3 = jax.random.normal(k_a, (B3, D), dtype=jnp.bfloat16)
    p3 = jax.random.normal(k_p, (B3, D), dtype=jnp.bfloat16)
    n3 = jax.random.normal(k_n, (B3, D), dtype=jnp.bfloat16)

    loss3 = jax.block_until_ready(
        triplet_loss(a3, p3, n3, margin, size_average=True))
    ref3 = triplet_loss_ref(a3, p3, n3, margin, True)
    assert jnp.allclose(loss3, ref3, rtol=1e-5, atol=1e-5), (loss3, ref3)

    print("KERNEL_OK")
</pallas_src>

<mosaic_0001>
module attributes {stable_mosaic.version = 11 : i64} {
  func.func @_triplet_loss_kernel(%arg0: i32, %arg1: memref<8x32xf32, #tpu.memory_space<vmem>>, %arg2: memref<8x32xf32, #tpu.memory_space<vmem>>, %arg3: memref<8x32xf32, #tpu.memory_space<vmem>>, %arg4: memref<1x1xf32, #tpu.memory_space<smem>>) attributes {dimension_semantics = [#tpu.dimension_semantics<parallel>], iteration_bounds = array<i64: 1>, scalar_prefetch = 0 : i64, scratch_operands = 0 : i64, tpu.core_type = #tpu.core_type<tc>, window_params = [{transform_indices = @transform_0, window_bounds = array<i64: 8, 32>}, {transform_indices = @transform_1, window_bounds = array<i64: 8, 32>}, {transform_indices = @transform_2, window_bounds = array<i64: 8, 32>}, {transform_indices = @transform_3, window_bounds = array<i64: 1, 1>}]} {
    %c0 = arith.constant 0 : index
    %c0_0 = arith.constant 0 : index
    %0 = vector.load %arg1[%c0, %c0_0] : memref<8x32xf32, #tpu.memory_space<vmem>>, vector<8x32xf32>
    %c0_1 = arith.constant 0 : index
    %c0_2 = arith.constant 0 : index
    %1 = vector.load %arg2[%c0_1, %c0_2] : memref<8x32xf32, #tpu.memory_space<vmem>>, vector<8x32xf32>
    %c0_3 = arith.constant 0 : index
    %c0_4 = arith.constant 0 : index
    %2 = vector.load %arg3[%c0_3, %c0_4] : memref<8x32xf32, #tpu.memory_space<vmem>>, vector<8x32xf32>
    %3 = arith.subf %2, %1 : vector<8x32xf32>
    %cst = arith.constant 2.000000e+00 : f32
    %4 = vector.broadcast %cst : f32 to vector<8x32xf32>
    %5 = arith.mulf %4, %0 : vector<8x32xf32>
    %6 = arith.subf %5, %1 : vector<8x32xf32>
    %7 = arith.subf %6, %2 : vector<8x32xf32>
    %8 = arith.mulf %3, %7 : vector<8x32xf32>
    %cst_5 = arith.constant dense<0.000000e+00> : vector<8xf32>
    %9 = vector.multi_reduction <add>, %8, %cst_5 [1] : vector<8x32xf32> to vector<8xf32>
    %10 = vector.shape_cast %9 : vector<8xf32> to vector<8x1xf32>
    %cst_6 = arith.constant 3.000000e-01 : f32
    %11 = vector.broadcast %cst_6 : f32 to vector<8x1xf32>
    %12 = arith.addf %10, %11 : vector<8x1xf32>
    %cst_7 = arith.constant 0.000000e+00 : f32
    %13 = vector.broadcast %cst_7 : f32 to vector<8x1xf32>
    %14 = arith.maximumf %12, %13 : vector<8x1xf32>
    %15 = vector.shape_cast %14 : vector<8x1xf32> to vector<1x8x1xf32>
    %cst_8 = arith.constant dense<0.000000e+00> : vector<1xf32>
    %16 = vector.multi_reduction <add>, %15, %cst_8 [1, 2] : vector<1x8x1xf32> to vector<1xf32>
    %17 = vector.shape_cast %16 : vector<1xf32> to vector<1x1x1xf32>
    %18 = vector.extract %17[0, 0, 0] : f32 from vector<1x1x1xf32>
    %c0_9 = arith.constant 0 : index
    %c0_10 = arith.constant 0 : index
    %19 = memref.load %arg4[%c0_9, %c0_10] : memref<1x1xf32, #tpu.memory_space<smem>>
    memref.store %18, %arg4[%c0_9, %c0_10] : memref<1x1xf32, #tpu.memory_space<smem>>
    return
  }
  func.func @transform_0(%arg0: i32) -> (i32, i32) {
    %c0_i32 = arith.constant 0 : i32
    %c0_i32_0 = arith.constant 0 : i32
    return %arg0, %c0_i32 : i32, i32
  }
  func.func @transform_1(%arg0: i32) -> (i32, i32) {
    %c0_i32 = arith.constant 0 : i32
    %c0_i32_0 = arith.constant 0 : i32
    return %arg0, %c0_i32 : i32, i32
  }
  func.func @transform_2(%arg0: i32) -> (i32, i32) {
    %c0_i32 = arith.constant 0 : i32
    %c0_i32_0 = arith.constant 0 : i32
    return %arg0, %c0_i32 : i32, i32
  }
  func.func @transform_3(%arg0: i32) -> (i32, i32) {
    %c0_i32 = arith.constant 0 : i32
    %c0_i32_0 = arith.constant 0 : i32
    return %arg0, %c0_i32 : i32, i32
  }
}

</mosaic_0001>

<llo_original>
// kernel: tpu_custom_call.1
$region0: #{tpu_custom_call.1}
  #allocation0 [shape = 'u32[]', space=smem, size = 0x4, offset = 0x4, fixed_abs, tag = 'smem constant byte address 0x4 - core index']
  #allocation1 [shape = 'u32[72,128]{1,0:T(1,128)}', space=vmem, size = 0x9000, scoped, tag = 'internal scratch']
  %s0 = inlined_call_operand.hbm [shape: f32[8,32], index: 0, kind: input, shape index: {}]
  %s1 = inlined_call_operand.hbm [shape: f32[8,32], index: 1, kind: input, shape index: {}]
  %s2 = inlined_call_operand.hbm [shape: f32[8,32], index: 2, kind: input, shape index: {}]
  %s3 = inlined_call_operand.hbm [shape: f32[1,1], index: 3, kind: output, shape index: {}]
  %s4 = sld [smem:[#allocation0]]
  $region34: #{tpu_custom_call.1} parent=0
    _
  %s6 = ssub.s32 1, %s4
  %s7 = scalar_select 0, %s6, %s4
  $region1: #{tpu_custom_call.1} parent=0
    #allocation2 [shape = 'u8[4096]{0}', space=vmem, size = 0x1000, scoped, tag = 'input window, operand 0, single buffered']
    #allocation3 [shape = 's32[1]{0}', space=sflag, size = 0x4, scoped, tag = 'scoped memory for tpu_custom_call.1']
    #allocation4 [shape = 's32[1]{0}', space=sflag, size = 0x4, scoped, tag = 'scoped memory for tpu_custom_call.1']
    #allocation5 [shape = 'u8[4096]{0}', space=vmem, size = 0x1000, scoped, tag = 'input window, operand 1, single buffered']
    #allocation6 [shape = 's32[1]{0}', space=sflag, size = 0x4, scoped, tag = 'scoped memory for tpu_custom_call.1']
    #allocation7 [shape = 'u8[4096]{0}', space=vmem, size = 0x1000, scoped, tag = 'input window, operand 2, single buffered']
    #allocation8 [shape = 'u8[512]{0}', space=smem, size = 0x200, scoped, tag = 'output window, operand 0, single buffered']
    %8 = vsyncpa [#allocation3], 0
    %9 = vsyncpa [#allocation6], 0
    %10 = vsyncpa [#allocation4], 0
    // Predicated region
    $region2: #{tpu_custom_call.1} parent=1 // pred_check
      _
    $region3: #{tpu_custom_call.1} parent=1 // pred_check_branch
      %12 = sbr.rel (0) target = $region5
    $region4: #{tpu_custom_call.1} parent=1 // pred_region
      %14 = vsyncadd [#allocation3], 0
      %s16 = sshll.u32 %s0, 4
      %s17 = int_to_ptr.hbm [resolvable:$true] %s16
      %s18 = sshll.u32 [#allocation2], 4
      %s19 = int_to_ptr.vmem [resolvable:$true] %s18
      %21 = dma.hbm_to_vmem [thread:$0]  %s17, 128, %s19, [#allocation3]
    $region5: #{tpu_custom_call.1} parent=1 // pred_fallthru
      _
    // Predicated region
    $region6: #{tpu_custom_call.1} parent=1 // pred_check
      _
    $region7: #{tpu_custom_call.1} parent=1 // pred_check_branch
      %23 = sbr.rel (0) target = $region9
    $region8: #{tpu_custom_call.1} parent=1 // pred_region
      %25 = vsyncadd [#allocation6], 0
      %s27 = sshll.u32 %s1, 4
      %s28 = int_to_ptr.hbm [resolvable:$true] %s27
      %s29 = sshll.u32 [#allocation5], 4
      %s30 = int_to_ptr.vmem [resolvable:$true] %s29
      %32 = dma.hbm_to_vmem [thread:$0]  %s28, 128, %s30, [#allocation6]
    $region9: #{tpu_custom_call.1} parent=1 // pred_fallthru
      _
    // Predicated region
    $region10: #{tpu_custom_call.1} parent=1 // pred_check
      _
    $region11: #{tpu_custom_call.1} parent=1 // pred_check_branch
      %34 = sbr.rel (0) target = $region13
    $region12: #{tpu_custom_call.1} parent=1 // pred_region
      %36 = vsyncadd [#allocation6], 0
      %s38 = sshll.u32 %s2, 4
      %s39 = int_to_ptr.hbm [resolvable:$true] %s38
      %s40 = sshll.u32 [#allocation7], 4
      %s41 = int_to_ptr.vmem [resolvable:$true] %s40
      %43 = dma.hbm_to_vmem [thread:$0]  %s39, 128, %s41, [#allocation6]
    $region13: #{tpu_custom_call.1} parent=1 // pred_fallthru
      _
    // Predicated region
    $region14: #{tpu_custom_call.1} parent=1 // pred_check
      _
    $region15: #{tpu_custom_call.1} parent=1 // pred_check_branch
      %45 = sbr.rel (0) target = $region17
    $region16: #{tpu_custom_call.1} parent=1 // pred_region
      %47 = dma.done [#allocation3], 128
    $region17: #{tpu_custom_call.1} parent=1 // pred_fallthru
      _
    // Predicated region
    $region18: #{tpu_custom_call.1} parent=1 // pred_check
      _
    $region19: #{tpu_custom_call.1} parent=1 // pred_check_branch
      %49 = sbr.rel (0) target = $region21
    $region20: #{tpu_custom_call.1} parent=1 // pred_region
      %51 = dma.done [#allocation6], 128
    $region21: #{tpu_custom_call.1} parent=1 // pred_fallthru
      _
    // Predicated region
    $region22: #{tpu_custom_call.1} parent=1 // pred_check
      _
    $region23: #{tpu_custom_call.1} parent=1 // pred_check_branch
      %53 = sbr.rel (0) target = $region25
    $region24: #{tpu_custom_call.1} parent=1 // pred_region
      %55 = dma.done [#allocation6], 128
    $region25: #{tpu_custom_call.1} parent=1 // pred_fallthru
      _
    %v56 = vld [vmem:[#allocation2] sm:$0xff]
    %v57 = vld [vmem:[#allocation5] sm:$0xff]
    %v58 = vld [vmem:[#allocation7] sm:$0xff]
    %v59 = vsub.f32 %v58, %v57
    %v60 = vmul.f32 %v56, 2.0
    %v61 = vsub.f32 %v60, %v57
    %v62 = vsub.f32 %v61, %v58
    %v63 = vmul.f32 %v59, %v62
    %vm64 = vcmask 261120
    %v65 = vsel %vm64, %v63, 0.0
    %66 = vadd.xlane.f32.xlu0 %v65
    %v67 = vpop.xlane.xlu0 %66
    %v68 = vadd.f32 %v67, 0.3
    %v69 = vmax.f32 %v68, 0.0
    %vm70 = vcmask 7168
    %v71 = vsel %vm70, %v69, 0.0
    %72 = vadd.xlane.f32.xlu0 %v71
    %v73 = vpop.xlane.xlu0 %72
    %v74 = vrot.slane %v73, 4
    %v75 = vadd.f32 %v73, %v74
    %v76 = vrot.slane %v75, 2
    %v77 = vadd.f32 %v75, %v76
    %v78 = vrot.slane %v77, 1
    %v79 = vadd.f32 %v77, %v78
    %s80 = vtos %v79
    %s81 = scalar_lea.smem [#allocation8], 0
    %82 = sst [smem:[%s81]] %s80
    // Predicated region
    $region26: #{tpu_custom_call.1} parent=1 // pred_check
      _
    $region27: #{tpu_custom_call.1} parent=1 // pred_check_branch
      %84 = sbr.rel (0) target = $region29
    $region28: #{tpu_custom_call.1} parent=1 // pred_region
      %86 = vsyncadd [#allocation4], 0
      %s88 = sshll.u32 %s3, 4
      %s89 = int_to_ptr.hbm [resolvable:$true] %s88
      %91 = dma.smem_to_hbm [#allocation8], 16, %s89, [#allocation4]
    $region29: #{tpu_custom_call.1} parent=1 // pred_fallthru
      _
    // Predicated region
    $region30: #{tpu_custom_call.1} parent=1 // pred_check
      _
    $region31: #{tpu_custom_call.1} parent=1 // pred_check_branch
      %93 = sbr.rel (0) target = $region33
    $region32: #{tpu_custom_call.1} parent=1 // pred_region
      %95 = dma.done [#allocation4], 16
    $region33: #{tpu_custom_call.1} parent=1 // pred_fallthru
      _
    %96 = sfence
    %97 = vsyncpa [#allocation3], 1
    %98 = vsyncpa [#allocation6], 1
    %99 = vsyncpa [#allocation4], 1

</llo_original>
